<compile_context>
chip_gen: v6e
topology: v6e:2x2x1
jax: 0.10.0
libtpu: 0.0.40
codegen_flags: <defaults>
</compile_context>

<pallas_src>
import jax
import jax.numpy as jnp
from jax.experimental import pallas as pl
from jax.experimental.pallas import tpu as pltpu


def _round_up(v, m):
    return (v + m - 1) // m * m


def _cdiv(a, b):
    return (a + b - 1) // b


# ---------------- Path A: single-pass fused kernel (per-batch slab resident) -----------
def eca_fused_kernel(x_ref, a_ref, o_ref):
    x = x_ref[0].astype(jnp.float32)                                  # (C, HWp)
    sums = jnp.sum(x, axis=-1, keepdims=True)                         # (C, 1)
    # Channel conv as banded (C, C) matvec; 1/(H*W) already folded into a_ref.
    logits = jnp.dot(a_ref[...], sums, preferred_element_type=jnp.float32)
    gate = 1.0 / (1.0 + jnp.exp(-logits))                             # sigmoid, (C, 1)
    o_ref[0] = (x * gate).astype(o_ref.dtype)


# ---------------- Path B: spatially tiled two-kernel pipeline ---------------------------
def eca_pool_gate_kernel(x_ref, a_ref, gate_ref, acc_ref):
    s = pl.program_id(1)

    @pl.when(s == 0)
    def _():
        acc_ref[...] = jnp.zeros_like(acc_ref)

    # Partial spatial sum of this (C, TS) tile -> (C, 1) channel sums (f32 accumulate).
    acc_ref[...] += jnp.sum(x_ref[0].astype(jnp.float32), axis=-1, keepdims=True)

    @pl.when(s == pl.num_programs(1) - 1)
    def _():
        logits = jnp.dot(a_ref[...], acc_ref[...],
                         preferred_element_type=jnp.float32)          # (C, 1)
        gate_ref[0] = 1.0 / (1.0 + jnp.exp(-logits))                  # sigmoid


def eca_scale_kernel(gate_ref, x_ref, o_ref):
    # (1, C, TS) * (1, C, 1) broadcast along lanes; lane-dense store.
    o_ref[...] = (x_ref[...] * gate_ref[...]).astype(o_ref.dtype)


def eca_forward(x, conv_weight, k_size=5, single_pass_bytes=4 * 1024 * 1024):
    """x: (B, C, H, W). conv_weight: PyTorch Conv1d weight, shape (1, 1, k) or (k,)."""
    B, C, H, W = x.shape
    HW = H * W
    pad = (k_size - 1) // 2
    w = conv_weight.reshape(-1).astype(jnp.float32)

    # Banded (Toeplitz) matrix A with the mean's 1/(H*W) folded in:
    #   logits[c] = sum_j w[j] * mean[c + j - pad]  (zero padding at channel edges)
    ci = jnp.arange(C)[:, None]
    cj = jnp.arange(C)[None, :]
    tap = cj - ci + pad
    a_mat = jnp.where((tap >= 0) & (tap < k_size),
                      w[jnp.clip(tap, 0, k_size - 1)], 0.0)
    a_mat = (a_mat / float(HW)).astype(jnp.float32)                   # (C, C)

    itemsize = jnp.dtype(x.dtype).itemsize
    vmem_cap = 48 * 1024 * 1024            # explicit, safely below v7x physical VMEM
    hw128 = _round_up(HW, 128)
    slab_bytes = C * hw128 * itemsize
    xf = x.reshape(B, C, HW)

    # ------------------------- Path A: single pass over x -------------------------------
    if slab_bytes <= single_pass_bytes:
        hw_p = hw128
        if hw_p != HW:
            # Zero padding: contributes nothing to sums; padded lanes sliced off below.
            xf = jnp.pad(xf, ((0, 0), (0, 0), (0, hw_p - HW)))
        out = pl.pallas_call(
            eca_fused_kernel,
            out_shape=jax.ShapeDtypeStruct((B, C, hw_p), x.dtype),
            grid=(B,),
            in_specs=[
                pl.BlockSpec((1, C, hw_p), lambda b: (b, 0, 0)),
                pl.BlockSpec((C, C), lambda b: (0, 0)),        # resident conv matrix
            ],
            out_specs=pl.BlockSpec((1, C, hw_p), lambda b: (b, 0, 0)),
            compiler_params=pltpu.CompilerParams(
                dimension_semantics=("parallel",),
                vmem_limit_bytes=vmem_cap),
        )(xf, a_mat)
        return out[:, :, :HW].reshape(B, C, H, W)

    # ------------------------- Path B: tiled two-kernel pipeline ------------------------
    # ~2 MiB lane-dense tiles, balanced across the spatial grid to minimize padding.
    tile_bytes = 2 * 1024 * 1024
    ts_cap = max(128, (tile_bytes // (itemsize * C)) // 128 * 128)
    if hw128 <= ts_cap:
        ts, s_tiles = hw128, 1
    else:
        s_tiles = _cdiv(hw128, ts_cap)
        ts = _cdiv(hw128 // 128, s_tiles) * 128
    hw_p = ts * s_tiles

    if hw_p != HW:
        xf = jnp.pad(xf, ((0, 0), (0, 0), (0, hw_p - HW)))

    gate = pl.pallas_call(
        eca_pool_gate_kernel,
        out_shape=jax.ShapeDtypeStruct((B, C, 1), jnp.float32),
        grid=(B, s_tiles),
        in_specs=[
            pl.BlockSpec((1, C, ts), lambda b, s: (b, 0, s)),
            pl.BlockSpec((C, C), lambda b, s: (0, 0)),          # resident conv matrix
        ],
        out_specs=pl.BlockSpec((1, C, 1), lambda b, s: (b, 0, 0)),
        scratch_shapes=[pltpu.VMEM((C, 1), jnp.float32)],
        compiler_params=pltpu.CompilerParams(
            dimension_semantics=("parallel", "arbitrary"),
            vmem_limit_bytes=vmem_cap),
    )(xf, a_mat)

    out = pl.pallas_call(
        eca_scale_kernel,
        out_shape=jax.ShapeDtypeStruct((B, C, hw_p), x.dtype),
        grid=(B, s_tiles),
        in_specs=[
            pl.BlockSpec((1, C, 1), lambda b, s: (b, 0, 0)),    # gate resident per batch
            pl.BlockSpec((1, C, ts), lambda b, s: (b, 0, s)),
        ],
        out_specs=pl.BlockSpec((1, C, ts), lambda b, s: (b, 0, s)),
        compiler_params=pltpu.CompilerParams(
            dimension_semantics=("parallel", "parallel"),
            vmem_limit_bytes=vmem_cap),
    )(gate, xf)

    return out[:, :, :HW].reshape(B, C, H, W)


if __name__ == "__main__":
    batch, channels, height, width, k_size = 2, 4, 16, 16, 5

    key = jax.random.PRNGKey(0)
    kx, kw = jax.random.split(key, 2)

    x = jax.random.normal(kx, (batch, channels, height, width), dtype=jnp.float32)
    # PyTorch Conv1d(1, 1, k, bias=False) init: U(-1/sqrt(k), 1/sqrt(k)), weight (1, 1, k).
    bound = 1.0 / (k_size ** 0.5)
    conv_weight = jax.random.uniform(kw, (1, 1, k_size), jnp.float32, -bound, bound)

    # Pure-JAX reference matching the PyTorch module (avg-pool -> conv1d -> sigmoid -> gate).
    pad = (k_size - 1) // 2
    w = conv_weight.reshape(-1)
    mean = x.reshape(batch, channels, -1).mean(-1)                      # (B, C)
    mean_p = jnp.pad(mean, ((0, 0), (pad, pad)))
    logits = sum(w[j] * mean_p[:, j:j + channels] for j in range(k_size))
    gate = 1.0 / (1.0 + jnp.exp(-logits))
    ref = x * gate[:, :, None, None]

    # Path A: single-pass fused kernel (selected automatically for small slabs).
    out_a = jax.block_until_ready(eca_forward(x, conv_weight, k_size=k_size))
    assert out_a.shape == x.shape
    assert jnp.allclose(out_a, ref, atol=1e-5, rtol=1e-5), "fused path mismatch vs reference"

    # Path B: spatially tiled two-kernel pipeline (forced), same semantics.
    out_b = jax.block_until_ready(
        eca_forward(x, conv_weight, k_size=k_size, single_pass_bytes=0))
    assert out_b.shape == x.shape
    assert jnp.allclose(out_b, ref, atol=1e-5, rtol=1e-5), "tiled path mismatch vs reference"

    print("KERNEL_OK")
</pallas_src>

<mosaic_0001>
module attributes {stable_mosaic.version = 11 : i64} {
  func.func @eca_fused_kernel(%arg0: i32, %arg1: memref<1x4x256xf32, #tpu.memory_space<vmem>>, %arg2: memref<4x4xf32, #tpu.memory_space<vmem>>, %arg3: memref<1x4x256xf32, #tpu.memory_space<vmem>>) attributes {dimension_semantics = [#tpu.dimension_semantics<parallel>], iteration_bounds = array<i64: 2>, scalar_prefetch = 0 : i64, scratch_operands = 0 : i64, tpu.core_type = #tpu.core_type<tc>, window_params = [{transform_indices = @transform_0, window_bounds = array<i64: 1, 4, 256>}, {pipeline_mode = #tpu.pipeline_mode<synchronous>, transform_indices = @transform_1, window_bounds = array<i64: 4, 4>}, {transform_indices = @transform_2, window_bounds = array<i64: 1, 4, 256>}]} {
    %c0 = arith.constant 0 : index
    %c0_0 = arith.constant 0 : index
    %c0_1 = arith.constant 0 : index
    %0 = vector.load %arg1[%c0, %c0_0, %c0_1] : memref<1x4x256xf32, #tpu.memory_space<vmem>>, vector<1x4x256xf32>
    %1 = vector.shape_cast %0 : vector<1x4x256xf32> to vector<4x256xf32>
    %cst = arith.constant dense<0.000000e+00> : vector<4xf32>
    %2 = vector.multi_reduction <add>, %1, %cst [1] : vector<4x256xf32> to vector<4xf32>
    %3 = vector.shape_cast %2 : vector<4xf32> to vector<4x1xf32>
    %c0_2 = arith.constant 0 : index
    %c0_3 = arith.constant 0 : index
    %4 = vector.load %arg2[%c0_2, %c0_3] : memref<4x4xf32, #tpu.memory_space<vmem>>, vector<4x4xf32>
    %cst_4 = arith.constant dense<0.000000e+00> : vector<4x1xf32>
    %5 = tpu.matmul %4, %3, %cst_4 {dimension_numbers = #tpu.dot_dimension_numbers<[1], [0], [0], [1], [0, 0, 1, 1], [], []>} : vector<4x4xf32>, vector<4x1xf32>, vector<4x1xf32> -> vector<4x1xf32>
    %cst_5 = arith.constant 0.000000e+00 : f32
    %6 = vector.broadcast %cst_5 : f32 to vector<4x1xf32>
    %7 = arith.subf %6, %5 : vector<4x1xf32>
    %8 = math.exp %7 : vector<4x1xf32>
    %cst_6 = arith.constant 1.000000e+00 : f32
    %9 = vector.broadcast %cst_6 : f32 to vector<4x1xf32>
    %10 = arith.addf %9, %8 : vector<4x1xf32>
    %cst_7 = arith.constant 1.000000e+00 : f32
    %11 = vector.broadcast %cst_7 : f32 to vector<4x1xf32>
    %12 = arith.divf %11, %10 : vector<4x1xf32>
    %13 = vector.broadcast %12 : vector<4x1xf32> to vector<4x256xf32>
    %14 = arith.mulf %1, %13 : vector<4x256xf32>
    %c0_8 = arith.constant 0 : index
    %c0_9 = arith.constant 0 : index
    %c0_10 = arith.constant 0 : index
    %15 = vector.load %arg3[%c0_8, %c0_9, %c0_10] : memref<1x4x256xf32, #tpu.memory_space<vmem>>, vector<1x4x256xf32>
    %16 = vector.shape_cast %15 : vector<1x4x256xf32> to vector<4x256xf32>
    %17 = vector.shape_cast %14 : vector<4x256xf32> to vector<1x4x256xf32>
    tpu.vector_store %arg3[%c0_8, %c0_9, %c0_10], %17 {strides = array<i32>} : memref<1x4x256xf32, #tpu.memory_space<vmem>>, vector<1x4x256xf32>,
    return
  }
  func.func @transform_0(%arg0: i32) -> (i32, i32, i32) {
    %c0_i32 = arith.constant 0 : i32
    %c0_i32_0 = arith.constant 0 : i32
    %c0_i32_1 = arith.constant 0 : i32
    return %arg0, %c0_i32, %c0_i32_0 : i32, i32, i32
  }
  func.func @transform_1(%arg0: i32) -> (i32, i32) {
    %c0_i32 = arith.constant 0 : i32
    %c0_i32_0 = arith.constant 0 : i32
    %c0_i32_1 = arith.constant 0 : i32
    return %c0_i32, %c0_i32_0 : i32, i32
  }
  func.func @transform_2(%arg0: i32) -> (i32, i32, i32) {
    %c0_i32 = arith.constant 0 : i32
    %c0_i32_0 = arith.constant 0 : i32
    %c0_i32_1 = arith.constant 0 : i32
    return %arg0, %c0_i32, %c0_i32_0 : i32, i32, i32
  }
}

</mosaic_0001>

<llo_original>
// kernel: tpu_custom_call.1
$region0: #{tpu_custom_call.1}
  #allocation0 [shape = 'u32[]', space=smem, size = 0x4, offset = 0x4, fixed_abs, tag = 'smem constant byte address 0x4 - core index']
  #allocation1 [shape = 'u32[144,128]{1,0:T(1,128)}', space=vmem, size = 0x12000, scoped, tag = 'internal scratch']
  %s0 = inlined_call_operand.hbm [shape: f32[2,4,256], index: 0, kind: input, shape index: {}]
  %s1 = inlined_call_operand.hbm [shape: f32[4,4], index: 1, kind: input, shape index: {}]
  %s2 = inlined_call_operand.hbm [shape: f32[2,4,256], index: 2, kind: output, shape index: {}]
  %s3 = sld [smem:[#allocation0]]
  $region49: #{tpu_custom_call.1} parent=0
    _
  %s5 = ssub.s32 1, %s3
  %s6 = scalar_select 0, %s5, %s3
  $region1: #{tpu_custom_call.1} parent=0
    #allocation2 [shape = 'u8[8192]{0}', space=vmem, size = 0x2000, scoped, tag = 'input window, operand 0']
    #allocation3 [shape = 's32[2]{0}', space=sflag, size = 0x8, scoped, tag = 'scoped memory for tpu_custom_call.1']
    #allocation4 [shape = 's32[2]{0}', space=sflag, size = 0x8, scoped, tag = 'scoped memory for tpu_custom_call.1']
    #allocation5 [shape = 'u8[2048]{0}', space=vmem, size = 0x800, scoped, tag = 'input window, operand 1, single buffered']
    #allocation6 [shape = 's32[1]{0}', space=sflag, size = 0x4, scoped, tag = 'scoped memory for tpu_custom_call.1']
    #allocation7 [shape = 'u8[8192]{0}', space=vmem, size = 0x2000, scoped, tag = 'output window, operand 0']
    %7 = vsyncpa [#allocation3], 0
    %s8 = scalar_lea.sflag [#allocation3], 1
    %9 = vsyncpa %s8, 0
    %10 = vsyncpa [#allocation6], 0
    %11 = vsyncpa [#allocation4], 0
    %s12 = scalar_lea.sflag [#allocation4], 1
    %13 = vsyncpa %s12, 0
    loop: start=0, step=1, limit=4
    $region2: #{tpu_custom_call.1} parent=1 // loop_pre_header
      _
    $region3: #{tpu_custom_call.1} parent=1 // loop_header
      %s15 = sphi 0, %s19
      %p16 = scmp.ge.s32.totalorder %s15, 4
      %s25 = sphi 0, %s27
      %s28 = sphi 0, %s25
      %s29 = sphi 0, %s28
      %s45 = sphi 0, %s29
      %s49 = sphi 0, %s49
      %s51 = sphi 0, %s49
      %s52 = sphi 0, %s51
      %s66 = sphi 0, %s52
      %s72 = sphi 0, %s74
      %s75 = sphi 0, %s72
      %s76 = sphi 0, %s75
      %s92 = sphi 0, %s76
    $region4: #{tpu_custom_call.1} parent=1 // loop_header_branch
      %18 = sbr.rel (%p16) target = $region8
    $region5: #{tpu_custom_call.1} parent=1 // loop_body
      %s20 = ssub.s32 %s15, 1
      %s21 = ssub.s32 %s15, 2
      %s22 = sadd.s32 %s15, 1
      %s23 = ssub.s32 %s15, %s22
      %p24 = scmp.eq.s32.totalorder %s23, 0
      %s26 = sadd.s32 %s25, 1
      %s27 = scalar_select %p24, %s25, %s26
      %p30 = pneg %p24
      %p31 = scmp.eq.s32.totalorder %s15, 1
      %p32 = por %p30, %p31
      %p33 = scmp.ne.s32.totalorder %s25, %s28
      %p34 = scmp.eq.s32.totalorder %s15, 0
      %p35 = por %p33, %p34
      %p36 = scmp.ne.s32.totalorder %s25, %s28
      %p37 = scmp.eq.s32.totalorder %s20, 1
      %p38 = por %p36, %p37
      %p39 = scmp.ne.s32.totalorder %s28, %s29
      %p40 = scmp.eq.s32.totalorder %s20, 0
      %p41 = por %p39, %p40
      %p42 = scmp.ne.s32.totalorder %s28, %s29
      %p43 = scmp.eq.s32.totalorder %s21, 1
      %p44 = por %p42, %p43
      %p46 = scmp.ne.s32.totalorder %s29, %s45
      %p47 = scmp.eq.s32.totalorder %s21, 0
      %p48 = por %p46, %p47
      %s50 = sadd.s32 %s49, 1
      %p53 = scmp.eq.s32.totalorder %s15, 1
      %p54 = scmp.ne.s32.totalorder %s49, %s51
      %p55 = scmp.eq.s32.totalorder %s15, 0
      %p56 = por %p54, %p55
      %p57 = scmp.ne.s32.totalorder %s49, %s51
      %p58 = scmp.eq.s32.totalorder %s20, 1
      %p59 = por %p57, %p58
      %p60 = scmp.ne.s32.totalorder %s51, %s52
      %p61 = scmp.eq.s32.totalorder %s20, 0
      %p62 = por %p60, %p61
      %p63 = scmp.ne.s32.totalorder %s51, %s52
      %p64 = scmp.eq.s32.totalorder %s21, 1
      %p65 = por %p63, %p64
      %p67 = scmp.ne.s32.totalorder %s52, %s66
      %p68 = scmp.eq.s32.totalorder %s21, 0
      %p69 = por %p67, %p68
      %s70 = ssub.s32 %s15, %s22
      %p71 = scmp.eq.s32.totalorder %s70, 0
      %s73 = sadd.s32 %s72, 1
      %s74 = scalar_select %p71, %s72, %s73
      %p77 = pneg %p71
      %p78 = scmp.eq.s32.totalorder %s15, 1
      %p79 = por %p77, %p78
      %p80 = scmp.ne.s32.totalorder %s72, %s75
      %p81 = scmp.eq.s32.totalorder %s15, 0
      %p82 = por %p80, %p81
      %p83 = scmp.ne.s32.totalorder %s72, %s75
      %p84 = scmp.eq.s32.totalorder %s20, 1
      %p85 = por %p83, %p84
      %p86 = scmp.ne.s32.totalorder %s75, %s76
      %p87 = scmp.eq.s32.totalorder %s20, 0
      %p88 = por %p86, %p87
      %p89 = scmp.ne.s32.totalorder %s75, %s76
      %p90 = scmp.eq.s32.totalorder %s21, 1
      %p91 = por %p89, %p90
      %p93 = scmp.ne.s32.totalorder %s76, %s92
      %p94 = scmp.eq.s32.totalorder %s21, 0
      %p95 = por %p93, %p94
      %p96 = scmp.le.s32.totalorder 1, %s15
      %p97 = scmp.lt.s32.totalorder %s15, 3
      %p98 = pnand %p96, %p97
      %p99 = pneg %p98
      // Predicated region
      $region9: #{tpu_custom_call.1} parent=5 // pred_check
        _
      $region10: #{tpu_custom_call.1} parent=5 // pred_check_branch
        %101 = sbr.rel (%p98) target = $region12
      $region11: #{tpu_custom_call.1} parent=5 // pred_region
        %s102 = ssub.s32 %s15, 1
        // Predicated region
        $region13: #{tpu_custom_call.1} parent=11 // pred_check
          %p103 = pneg %p62
        $region14: #{tpu_custom_call.1} parent=11 // pred_check_branch
          %105 = sbr.rel (%p103) target = $region16
        $region15: #{tpu_custom_call.1} parent=11 // pred_region
          %s107 = ssub.s32 64, 64
          %108 = vsyncadd [#allocation6], %s107
          %s110 = sshll.u32 [#allocation5], 4
          %s111 = int_to_ptr.vmem [resolvable:$true] %s110
          %113 = dma.hbm_to_vmem [thread:$0]  %s1, 64, %s111, [#allocation6]
        $region16: #{tpu_custom_call.1} parent=11 // pred_fallthru
          _
      $region12: #{tpu_custom_call.1} parent=5 // pred_fallthru
        _
      %p114 = scmp.lt.s32.totalorder %s15, 2
      // Predicated region
      $region17: #{tpu_custom_call.1} parent=5 // pred_check
        %p115 = pneg %p114
      $region18: #{tpu_custom_call.1} parent=5 // pred_check_branch
        %117 = sbr.rel (%p115) target = $region20
      $region19: #{tpu_custom_call.1} parent=5 // pred_region
        // Predicated region
        $region21: #{tpu_custom_call.1} parent=19 // pred_check
          %p118 = pneg %p35
        $region22: #{tpu_custom_call.1} parent=19 // pred_check_branch
          %120 = sbr.rel (%p118) target = $region24
        $region23: #{tpu_custom_call.1} parent=19 // pred_region
          %s121 = sand.u32 %s25, 1
          %s122 = scalar_lea.sflag [#allocation3], %s121
          %s123 = sand.u32 %s25, 1
          %s124 = smul.addr %s123, 8
          %s125 = scalar_lea.vmem [#allocation2], %s124
          %s127 = ssub.s32 128, 128
          %128 = vsyncadd %s122, %s127
          %s129 = smul.addr %s15, 2
          %s130 = smul.addr %s129, 64
          %s131 = scalar_lea.hbm %s0, %s130
          %s133 = sshll.u32 %s125, 4
          %s134 = int_to_ptr.vmem [resolvable:$true] %s133
          %136 = dma.hbm_to_vmem [thread:$0]  %s131, 128, %s134, %s122
        $region24: #{tpu_custom_call.1} parent=19 // pred_fallthru
          _
      $region20: #{tpu_custom_call.1} parent=5 // pred_fallthru
        _
      %p137 = scmp.le.s32.totalorder 1, %s15
      %p138 = scmp.lt.s32.totalorder %s15, 3
      %p139 = pnand %p137, %p138
      %p140 = pneg %p139
      // Predicated region
      $region25: #{tpu_custom_call.1} parent=5 // pred_check
        _
      $region26: #{tpu_custom_call.1} parent=5 // pred_check_branch
        %142 = sbr.rel (%p139) target = $region28
      $region27: #{tpu_custom_call.1} parent=5 // pred_region
        %s143 = ssub.s32 %s15, 1
        %s144 = sand.u32 %s28, 1
        %s145 = scalar_lea.sflag [#allocation3], %s144
        %s146 = sand.u32 %s28, 1
        %s147 = smul.addr %s146, 8
        %s148 = scalar_lea.vmem [#allocation2], %s147
        // Predicated region
        $region29: #{tpu_custom_call.1} parent=27 // pred_check
          %p149 = pneg %p41
        $region30: #{tpu_custom_call.1} parent=27 // pred_check_branch
          %151 = sbr.rel (%p149) target = $region32
        $region31: #{tpu_custom_call.1} parent=27 // pred_region
          %152 = dma.done %s145, 128
        $region32: #{tpu_custom_call.1} parent=27 // pred_fallthru
          _
        // Predicated region
        $region33: #{tpu_custom_call.1} parent=27 // pred_check
          %p153 = pneg %p62
        $region34: #{tpu_custom_call.1} parent=27 // pred_check_branch
          %155 = sbr.rel (%p153) target = $region36
        $region35: #{tpu_custom_call.1} parent=27 // pred_region
          %156 = dma.done [#allocation6], 64
        $region36: #{tpu_custom_call.1} parent=27 // pred_fallthru
          _
        %s157 = sand.u32 %s28, 1
        %s158 = scalar_lea.sflag [#allocation3], %s157
        %s159 = sand.u32 %s28, 1
        %s160 = smul.addr %s159, 8
        %s161 = scalar_lea.vmem [#allocation2], %s160
        %p162 = pneg %p41
        %p163 = pneg %p38
        %p164 = pneg %p62
        %p165 = pneg %p59
        %p166 = pneg %p88
        %p167 = pneg %p85
        %s168 = sand.u32 %s75, 1
        %s169 = scalar_lea.sflag [#allocation4], %s168
        %s170 = sand.u32 %s75, 1
        %s171 = smul.addr %s170, 8
        %s172 = scalar_lea.vmem [#allocation7], %s171
        %v173 = vld [vmem:[%s148] sm:$0xff]
        %v175 = vcombine.high %v173, %v173
        %vm177 = vcmask 1043456
        %v178 = vsel %vm177, %v173, 0.0
        %v179 = vsel %vm177, %v175, 0.0
        %v180 = vadd.f32 %v178, %v179
        %181 = vadd.xlane.f32.xlu0 %v180
        %v182 = vpop.xlane.xlu0 %181
        %v183 = vld [vmem:[#allocation5] sm:$0xf]
        %vm184 = vcmask 31744
        %v186 = vsel %vm184, %v183, 0
        %v189 = vsel %vm177, %v182, 0
        %191 = vmatprep.subr.mxu0 0.0
        %192 = vmatpush1.msra.mxu0 0.0
        %193 = vmatprep.subr.mxu0 0.0
        %194 = vmatpush1.msra.mxu0 0.0
        %195 = vmatprep.subr.mxu0 0.0
        %196 = vmatpush1.msra.mxu0 0.0
        %197 = vmatprep.subr.mxu0 0.0
        %198 = vmatpush1.msra.mxu0 0.0
        %199 = vmatprep.subr.mxu0 0.0
        %200 = vmatpush1.msra.mxu0 0.0
        %201 = vmatprep.subr.mxu0 0.0
        %202 = vmatpush1.msra.mxu0 0.0
        %203 = vmatprep.subr.mxu0 0.0
        %204 = vmatpush1.msra.mxu0 0.0
        %205 = vmatprep.subr.mxu0 0.0
        %206 = vmatpush1.msra.mxu0 0.0
        %207 = vmatprep.subr.mxu0 0.0
        %208 = vmatpush1.msra.mxu0 0.0
        %209 = vmatprep.subr.mxu0 0.0
        %210 = vmatpush1.msra.mxu0 0.0
        %211 = vmatprep.subr.mxu0 0.0
        %212 = vmatpush1.msra.mxu0 0.0
        %213 = vmatprep.subr.mxu0 0.0
        %214 = vmatpush1.msra.mxu0 0.0
        %215 = vmatprep.subr.mxu0 0.0
        %216 = vmatpush1.msra.mxu0 0.0
        %217 = vmatprep.subr.mxu0 0.0
        %218 = vmatpush1.msra.mxu0 0.0
        %219 = vmatprep.subr.mxu0 0.0
        %220 = vmatpush1.msra.mxu0 0.0
        %221 = vmatprep.subr.mxu0 0.0
        %222 = vmatpush1.msra.mxu0 %v189
        %223 = vmatprep.subr.mxu0 0.0
        %224 = vmatpush2.msra.mxu0 0.0
        %225 = vmatprep.subr.mxu0 0.0
        %226 = vmatpush2.msra.mxu0 0.0
        %227 = vmatprep.subr.mxu0 0.0
        %228 = vmatpush2.msra.mxu0 0.0
        %229 = vmatprep.subr.mxu0 0.0
        %230 = vmatpush2.msra.mxu0 0.0
        %231 = vmatprep.subr.mxu0 0.0
        %232 = vmatpush2.msra.mxu0 0.0
        %233 = vmatprep.subr.mxu0 0.0
        %234 = vmatpush2.msra.mxu0 0.0
        %235 = vmatprep.subr.mxu0 0.0
        %236 = vmatpush2.msra.mxu0 0.0
        %237 = vmatprep.subr.mxu0 0.0
        %238 = vmatpush2.msra.mxu0 0.0
        %239 = vmatprep.subr.mxu0 0.0
        %240 = vmatpush2.msra.mxu0 0.0
        %241 = vmatprep.subr.mxu0 0.0
        %242 = vmatpush2.msra.mxu0 0.0
        %243 = vmatprep.subr.mxu0 0.0
        %244 = vmatpush2.msra.mxu0 0.0
        %245 = vmatprep.subr.mxu0 0.0
        %246 = vmatpush2.msra.mxu0 0.0
        %247 = vmatprep.subr.mxu0 0.0
        %248 = vmatpush2.msra.mxu0 0.0
        %249 = vmatprep.subr.mxu0 0.0
        %250 = vmatpush2.msra.mxu0 0.0
        %251 = vmatprep.subr.mxu0 0.0
        %252 = vmatpush2.msra.mxu0 0.0
        %253 = vmatprep.subr.mxu0 0.0
        %254 = vmatpush2.msra.mxu0 0.0
        %255 = vmatprep.mubr.f32.mxu0 0.0
        %256 = vmatmul.mubr.f32.gmra.mxu0 %v186
        %v257 = vpop.f32.mrf.mxu0
        %v258 = vadd.f32 0.0, %v257
        %v259 = vpop.f32.mrf.mxu0
        %260 = vdwg.mxu0
        %v261 = vsub.f32 0.0, %v258
        %v262 = vmul.f32 %v261, 1.442695
        %v263 = vpow.pop %v262
        %v264 = vadd.f32 %v263, 1.0
        %v265 = vrcp.pop %v264
        %v266 = vmul.f32 1.0, %v265
        %268 = vset.pattern.permute.xlu0 0
        %269 = vperm.xlu0 %268, %v266
        %v270 = vpop.permute.xlu0 %269
        %v272 = vunpack.c.l.s4 839922192
        %v273 = vunpack.c.0.s8 %v272
        %v274 = vlaneseq
        %v275 = vshrl.u32 %v274, 7
        %v276 = vsub.s32 %v273, %v275
        %v277 = vrot.slane %v270, %v276
        %v279 = vmul.f32 %v173, %v277
        %280 = vst [vmem:[%s172] sm:$0xff] %v279
        %s281 = sand.u32 %s75, 1
        %s282 = scalar_lea.sflag [#allocation4], %s281
        %s283 = sand.u32 %s75, 1
        %s284 = smul.addr %s283, 8
        %s285 = scalar_lea.vmem [#allocation7], %s284
        // Predicated region
        $region37: #{tpu_custom_call.1} parent=27 // pred_check
          %p286 = pneg %p85
        $region38: #{tpu_custom_call.1} parent=27 // pred_check_branch
          %288 = sbr.rel (%p286) target = $region40
        $region39: #{tpu_custom_call.1} parent=27 // pred_region
          %s290 = ssub.s32 128, 128
          %291 = vsyncadd %s282, %s290
          %s292 = smul.addr %s20, 2
          %s293 = smul.addr %s292, 64
          %s294 = scalar_lea.hbm %s2, %s293
          %s296 = sshll.u32 %s285, 4
          %s297 = int_to_ptr.vmem [resolvable:$true] %s296
          %299 = dma.vmem_to_hbm [thread:$0]  %s297, 128, %s294, %s282
        $region40: #{tpu_custom_call.1} parent=27 // pred_fallthru
          _
      $region28: #{tpu_custom_call.1} parent=5 // pred_fallthru
        _
      %p300 = scmp.le.s32.totalorder 2, %s15
      // Predicated region
      $region41: #{tpu_custom_call.1} parent=5 // pred_check
        %p301 = pneg %p300
      $region42: #{tpu_custom_call.1} parent=5 // pred_check_branch
        %303 = sbr.rel (%p301) target = $region44
      $region43: #{tpu_custom_call.1} parent=5 // pred_region
        %s304 = ssub.s32 %s15, 2
        // Predicated region
        $region45: #{tpu_custom_call.1} parent=43 // pred_check
          %p305 = pneg %p91
        $region46: #{tpu_custom_call.1} parent=43 // pred_check_branch
          %307 = sbr.rel (%p305) target = $region48
        $region47: #{tpu_custom_call.1} parent=43 // pred_region
          %s308 = sand.u32 %s76, 1
          %s309 = scalar_lea.sflag [#allocation4], %s308
          %s310 = sand.u32 %s76, 1
          %s311 = smul.addr %s310, 8
          %s312 = scalar_lea.vmem [#allocation7], %s311
          %313 = dma.done %s309, 128
        $region48: #{tpu_custom_call.1} parent=43 // pred_fallthru
          _
      $region44: #{tpu_custom_call.1} parent=5 // pred_fallthru
        _
    $region6: #{tpu_custom_call.1} parent=1 // loop_footer
      %s19 = sadd.s32 1, %s15
    $region7: #{tpu_custom_call.1} parent=1 // loop_footer_branch
      %14 = sbr.rel target = $region3
    $region8: #{tpu_custom_call.1} parent=1 // loop_exit
      _
    %314 = vsyncpa [#allocation3], 1
    %s315 = scalar_lea.sflag [#allocation3], 1
    %316 = vsyncpa %s315, 1
    %317 = vsyncpa [#allocation6], 1
    %318 = vsyncpa [#allocation4], 1
    %s319 = scalar_lea.sflag [#allocation4], 1
    %320 = vsyncpa %s319, 1

</llo_original>
